<compile_context>
chip_gen: v5e
topology: v5e:2x2
jax: 0.10.0
libtpu: 0.0.40
codegen_flags: <defaults>
</compile_context>

<pallas_src>
import functools

import jax
import jax.numpy as jnp
from jax.experimental import pallas as pl
from jax.experimental.pallas import tpu as pltpu


def _round_up(n, m):
    return ((n + m - 1) // m) * m


def _leaky_relu(v, slope=0.01):
    # max(v, slope*v) == leaky_relu for slope in (0, 1)
    return jnp.maximum(v, slope * v)


# ---------------------------------------------------------------------------
# Kernel: one batch-row tile through all four linear layers (fused).
# ---------------------------------------------------------------------------
def mlp_kernel(x_ref, w1_ref, b1_ref, w2_ref, b2_ref, w3_ref, b3_ref,
               w5_ref, b5_ref, o_ref):
    x = x_ref[...].astype(jnp.bfloat16)

    h = jnp.dot(x, w1_ref[...], preferred_element_type=jnp.float32) + b1_ref[...]
    h = _leaky_relu(h).astype(jnp.bfloat16)

    h = jnp.dot(h, w2_ref[...], preferred_element_type=jnp.float32) + b2_ref[...]
    h = _leaky_relu(h).astype(jnp.bfloat16)

    h = jnp.dot(h, w3_ref[...], preferred_element_type=jnp.float32) + b3_ref[...]
    h = _leaky_relu(h).astype(jnp.bfloat16)

    o_ref[...] = (
        jnp.dot(h, w5_ref[...], preferred_element_type=jnp.float32) + b5_ref[...])


# ---------------------------------------------------------------------------
# One-time parameter prep: cast weights to bf16, biases to (1, out) f32.
# No shape padding — full-shape blocks are always legal BlockSpecs.
# ---------------------------------------------------------------------------
def prepare_params(params):
    return tuple((w.astype(jnp.bfloat16), b.astype(jnp.float32).reshape(1, -1))
                 for (w, b) in params)


# ---------------------------------------------------------------------------
# Device-aware batch tile: one tile per TensorCore, rounded up to 8 sublanes.
# ---------------------------------------------------------------------------
def pick_batch_tile(batch):
    kind = ""
    try:
        kind = jax.devices()[0].device_kind.lower()
    except Exception:
        pass
    # 2 TensorCores per chip on v7x (and megacore v4/v5p); 1 on v5e/v6e.
    n_tc = 2 if any(t in kind for t in ("v7", "v4", "v5p")) else 1
    tb = _round_up(max(1, -(-batch // n_tc)), 8)
    return min(tb, 1024)  # cap tile for very large batches (VMEM headroom)


# ---------------------------------------------------------------------------
# Wrapper: 1-D grid over batch rows, resident weights, true-width output.
# ---------------------------------------------------------------------------
@functools.partial(jax.jit, static_argnames=("tb",))
def mlp_forward(x, prepped, tb):
    (w1, b1), (w2, b2), (w3, b3), (w5, b5) = prepped
    B, K = x.shape
    L = w5.shape[1]

    def resident(arr):
        # constant block index -> DMA'd once, stays resident in VMEM
        return pl.BlockSpec(arr.shape, lambda i: (0, 0))

    return pl.pallas_call(
        mlp_kernel,
        out_shape=jax.ShapeDtypeStruct((B, L), jnp.float32),
        grid=(pl.cdiv(B, tb),),
        in_specs=[
            pl.BlockSpec((tb, K), lambda i: (i, 0)),   # x tile (pipelined; last block ragged)
            resident(w1), resident(b1),
            resident(w2), resident(b2),
            resident(w3), resident(b3),
            resident(w5), resident(b5),
        ],
        out_specs=pl.BlockSpec((tb, L), lambda i: (i, 0)),
        compiler_params=pltpu.CompilerParams(
            dimension_semantics=("parallel",)),
    )(x, w1, b1, w2, b2, w3, b3, w5, b5)


# ---------------------------------------------------------------------------
# PyTorch-style init: kaiming_normal_ weight, default uniform bias.
# Weight stored pre-transposed as (in_features, out_features).
# ---------------------------------------------------------------------------
def init_linear(key, fan_in, fan_out):
    kw, kb = jax.random.split(key)
    std = (2.0 / fan_in) ** 0.5
    w = jax.random.normal(kw, (fan_in, fan_out), dtype=jnp.float32) * std
    bound = 1.0 / (fan_in ** 0.5)
    b = jax.random.uniform(kb, (fan_out,), dtype=jnp.float32,
                           minval=-bound, maxval=bound)
    return w, b


if __name__ == "__main__":
    # Small, self-consistent sizes (hidden3 == hidden4 is required by forward()).
    batch = 200                       # not a multiple of 8*TCs: exercises the ragged last block
    k_bins, hidden1, hidden2 = 32, 64, 64
    hidden3, hidden4, hidden5, last_layer = 32, 32, 32, 16
    assert hidden3 == hidden4, "forward() feeds fc3 output into fc5(hidden4 -> last)"
    # TODO(synk): fc4, bn1-4, dropout and hidden5 are unused by forward(); omitted.

    root = jax.random.PRNGKey(0)
    kx, k1, k2, k3, k5 = jax.random.split(root, 5)

    params = (
        init_linear(k1, k_bins, hidden1),
        init_linear(k2, hidden1, hidden2),
        init_linear(k3, hidden2, hidden3),
        init_linear(k5, hidden4, last_layer),   # fc5
    )
    x = jax.random.normal(kx, (batch, k_bins), dtype=jnp.float32)

    prepped = prepare_params(params)
    tb = pick_batch_tile(batch)
    out = mlp_forward(x, prepped, tb)
    out = jax.block_until_ready(out)

    # Pure-JAX reference using the same bf16-at-the-dot scheme (f32 epilogue).
    def ref_forward(xv, ps):
        h = xv
        for idx, (w, b) in enumerate(ps):
            h = jnp.dot(h.astype(jnp.bfloat16), w.astype(jnp.bfloat16),
                        preferred_element_type=jnp.float32) + b[None, :]
            if idx < 3:
                h = _leaky_relu(h)
        return h

    ref = ref_forward(x, params)
    assert out.shape == (batch, last_layer)
    assert jnp.allclose(out, ref, atol=2e-3, rtol=2e-3), (
        float(jnp.max(jnp.abs(out - ref))))

    print("KERNEL_OK")
</pallas_src>

<mosaic_0001>
module attributes {stable_mosaic.version = 11 : i64} {
  func.func @mlp_kernel(%arg0: i32, %arg1: memref<200x32xf32, #tpu.memory_space<vmem>>, %arg2: memref<32x64xbf16, #tpu.memory_space<vmem>>, %arg3: memref<1x64xf32, #tpu.memory_space<vmem>>, %arg4: memref<64x64xbf16, #tpu.memory_space<vmem>>, %arg5: memref<1x64xf32, #tpu.memory_space<vmem>>, %arg6: memref<64x32xbf16, #tpu.memory_space<vmem>>, %arg7: memref<1x32xf32, #tpu.memory_space<vmem>>, %arg8: memref<32x16xbf16, #tpu.memory_space<vmem>>, %arg9: memref<1x16xf32, #tpu.memory_space<vmem>>, %arg10: memref<200x16xf32, #tpu.memory_space<vmem>>) attributes {dimension_semantics = [#tpu.dimension_semantics<parallel>], iteration_bounds = array<i64: 1>, scalar_prefetch = 0 : i64, scratch_operands = 0 : i64, tpu.core_type = #tpu.core_type<tc>, window_params = [{transform_indices = @transform_0, window_bounds = array<i64: 200, 32>}, {pipeline_mode = #tpu.pipeline_mode<synchronous>, transform_indices = @transform_1, window_bounds = array<i64: 32, 64>}, {pipeline_mode = #tpu.pipeline_mode<synchronous>, transform_indices = @transform_2, window_bounds = array<i64: 1, 64>}, {pipeline_mode = #tpu.pipeline_mode<synchronous>, transform_indices = @transform_3, window_bounds = array<i64: 64, 64>}, {pipeline_mode = #tpu.pipeline_mode<synchronous>, transform_indices = @transform_4, window_bounds = array<i64: 1, 64>}, {pipeline_mode = #tpu.pipeline_mode<synchronous>, transform_indices = @transform_5, window_bounds = array<i64: 64, 32>}, {pipeline_mode = #tpu.pipeline_mode<synchronous>, transform_indices = @transform_6, window_bounds = array<i64: 1, 32>}, {pipeline_mode = #tpu.pipeline_mode<synchronous>, transform_indices = @transform_7, window_bounds = array<i64: 32, 16>}, {pipeline_mode = #tpu.pipeline_mode<synchronous>, transform_indices = @transform_8, window_bounds = array<i64: 1, 16>}, {transform_indices = @transform_9, window_bounds = array<i64: 200, 16>}]} {
    %c0 = arith.constant 0 : index
    %c0_0 = arith.constant 0 : index
    %0 = vector.load %arg1[%c0, %c0_0] : memref<200x32xf32, #tpu.memory_space<vmem>>, vector<200x32xf32>
    %1 = arith.truncf %0 : vector<200x32xf32> to vector<200x32xbf16>
    %c0_1 = arith.constant 0 : index
    %c0_2 = arith.constant 0 : index
    %2 = vector.load %arg2[%c0_1, %c0_2] : memref<32x64xbf16, #tpu.memory_space<vmem>>, vector<32x64xbf16>
    %cst = arith.constant dense<0.000000e+00> : vector<200x64xf32>
    %3 = tpu.matmul %1, %2, %cst {dimension_numbers = #tpu.dot_dimension_numbers<[1], [0], [0], [1], [0, 0, 1, 1], [], []>} : vector<200x32xbf16>, vector<32x64xbf16>, vector<200x64xf32> -> vector<200x64xf32>
    %c0_3 = arith.constant 0 : index
    %c0_4 = arith.constant 0 : index
    %4 = vector.load %arg3[%c0_3, %c0_4] : memref<1x64xf32, #tpu.memory_space<vmem>>, vector<1x64xf32>
    %5 = vector.broadcast %4 : vector<1x64xf32> to vector<200x64xf32>
    %6 = arith.addf %3, %5 : vector<200x64xf32>
    %cst_5 = arith.constant 0.00999999977 : f32
    %7 = vector.broadcast %cst_5 : f32 to vector<200x64xf32>
    %8 = arith.mulf %7, %6 : vector<200x64xf32>
    %9 = arith.maximumf %6, %8 : vector<200x64xf32>
    %10 = arith.truncf %9 : vector<200x64xf32> to vector<200x64xbf16>
    %c0_6 = arith.constant 0 : index
    %c0_7 = arith.constant 0 : index
    %11 = vector.load %arg4[%c0_6, %c0_7] : memref<64x64xbf16, #tpu.memory_space<vmem>>, vector<64x64xbf16>
    %cst_8 = arith.constant dense<0.000000e+00> : vector<200x64xf32>
    %12 = tpu.matmul %10, %11, %cst_8 {dimension_numbers = #tpu.dot_dimension_numbers<[1], [0], [0], [1], [0, 0, 1, 1], [], []>} : vector<200x64xbf16>, vector<64x64xbf16>, vector<200x64xf32> -> vector<200x64xf32>
    %c0_9 = arith.constant 0 : index
    %c0_10 = arith.constant 0 : index
    %13 = vector.load %arg5[%c0_9, %c0_10] : memref<1x64xf32, #tpu.memory_space<vmem>>, vector<1x64xf32>
    %14 = vector.broadcast %13 : vector<1x64xf32> to vector<200x64xf32>
    %15 = arith.addf %12, %14 : vector<200x64xf32>
    %cst_11 = arith.constant 0.00999999977 : f32
    %16 = vector.broadcast %cst_11 : f32 to vector<200x64xf32>
    %17 = arith.mulf %16, %15 : vector<200x64xf32>
    %18 = arith.maximumf %15, %17 : vector<200x64xf32>
    %19 = arith.truncf %18 : vector<200x64xf32> to vector<200x64xbf16>
    %c0_12 = arith.constant 0 : index
    %c0_13 = arith.constant 0 : index
    %20 = vector.load %arg6[%c0_12, %c0_13] : memref<64x32xbf16, #tpu.memory_space<vmem>>, vector<64x32xbf16>
    %cst_14 = arith.constant dense<0.000000e+00> : vector<200x32xf32>
    %21 = tpu.matmul %19, %20, %cst_14 {dimension_numbers = #tpu.dot_dimension_numbers<[1], [0], [0], [1], [0, 0, 1, 1], [], []>} : vector<200x64xbf16>, vector<64x32xbf16>, vector<200x32xf32> -> vector<200x32xf32>
    %c0_15 = arith.constant 0 : index
    %c0_16 = arith.constant 0 : index
    %22 = vector.load %arg7[%c0_15, %c0_16] : memref<1x32xf32, #tpu.memory_space<vmem>>, vector<1x32xf32>
    %23 = vector.broadcast %22 : vector<1x32xf32> to vector<200x32xf32>
    %24 = arith.addf %21, %23 : vector<200x32xf32>
    %cst_17 = arith.constant 0.00999999977 : f32
    %25 = vector.broadcast %cst_17 : f32 to vector<200x32xf32>
    %26 = arith.mulf %25, %24 : vector<200x32xf32>
    %27 = arith.maximumf %24, %26 : vector<200x32xf32>
    %28 = arith.truncf %27 : vector<200x32xf32> to vector<200x32xbf16>
    %c0_18 = arith.constant 0 : index
    %c0_19 = arith.constant 0 : index
    %29 = vector.load %arg8[%c0_18, %c0_19] : memref<32x16xbf16, #tpu.memory_space<vmem>>, vector<32x16xbf16>
    %cst_20 = arith.constant dense<0.000000e+00> : vector<200x16xf32>
    %30 = tpu.matmul %28, %29, %cst_20 {dimension_numbers = #tpu.dot_dimension_numbers<[1], [0], [0], [1], [0, 0, 1, 1], [], []>} : vector<200x32xbf16>, vector<32x16xbf16>, vector<200x16xf32> -> vector<200x16xf32>
    %c0_21 = arith.constant 0 : index
    %c0_22 = arith.constant 0 : index
    %31 = vector.load %arg9[%c0_21, %c0_22] : memref<1x16xf32, #tpu.memory_space<vmem>>, vector<1x16xf32>
    %32 = vector.broadcast %31 : vector<1x16xf32> to vector<200x16xf32>
    %33 = arith.addf %30, %32 : vector<200x16xf32>
    %c0_23 = arith.constant 0 : index
    %c0_24 = arith.constant 0 : index
    %34 = vector.load %arg10[%c0_23, %c0_24] : memref<200x16xf32, #tpu.memory_space<vmem>>, vector<200x16xf32>
    tpu.vector_store %arg10[%c0_23, %c0_24], %33 {strides = array<i32>} : memref<200x16xf32, #tpu.memory_space<vmem>>, vector<200x16xf32>,
    return
  }
  func.func @transform_0(%arg0: i32) -> (i32, i32) {
    %c0_i32 = arith.constant 0 : i32
    %c0_i32_0 = arith.constant 0 : i32
    return %arg0, %c0_i32 : i32, i32
  }
  func.func @transform_1(%arg0: i32) -> (i32, i32) {
    %c0_i32 = arith.constant 0 : i32
    %c0_i32_0 = arith.constant 0 : i32
    %c0_i32_1 = arith.constant 0 : i32
    return %c0_i32, %c0_i32_0 : i32, i32
  }
  func.func @transform_2(%arg0: i32) -> (i32, i32) {
    %c0_i32 = arith.constant 0 : i32
    %c0_i32_0 = arith.constant 0 : i32
    %c0_i32_1 = arith.constant 0 : i32
    return %c0_i32, %c0_i32_0 : i32, i32
  }
  func.func @transform_3(%arg0: i32) -> (i32, i32) {
    %c0_i32 = arith.constant 0 : i32
    %c0_i32_0 = arith.constant 0 : i32
    %c0_i32_1 = arith.constant 0 : i32
    return %c0_i32, %c0_i32_0 : i32, i32
  }
  func.func @transform_4(%arg0: i32) -> (i32, i32) {
    %c0_i32 = arith.constant 0 : i32
    %c0_i32_0 = arith.constant 0 : i32
    %c0_i32_1 = arith.constant 0 : i32
    return %c0_i32, %c0_i32_0 : i32, i32
  }
  func.func @transform_5(%arg0: i32) -> (i32, i32) {
    %c0_i32 = arith.constant 0 : i32
    %c0_i32_0 = arith.constant 0 : i32
    %c0_i32_1 = arith.constant 0 : i32
    return %c0_i32, %c0_i32_0 : i32, i32
  }
  func.func @transform_6(%arg0: i32) -> (i32, i32) {
    %c0_i32 = arith.constant 0 : i32
    %c0_i32_0 = arith.constant 0 : i32
    %c0_i32_1 = arith.constant 0 : i32
    return %c0_i32, %c0_i32_0 : i32, i32
  }
  func.func @transform_7(%arg0: i32) -> (i32, i32) {
    %c0_i32 = arith.constant 0 : i32
    %c0_i32_0 = arith.constant 0 : i32
    %c0_i32_1 = arith.constant 0 : i32
    return %c0_i32, %c0_i32_0 : i32, i32
  }
  func.func @transform_8(%arg0: i32) -> (i32, i32) {
    %c0_i32 = arith.constant 0 : i32
    %c0_i32_0 = arith.constant 0 : i32
    %c0_i32_1 = arith.constant 0 : i32
    return %c0_i32, %c0_i32_0 : i32, i32
  }
  func.func @transform_9(%arg0: i32) -> (i32, i32) {
    %c0_i32 = arith.constant 0 : i32
    %c0_i32_0 = arith.constant 0 : i32
    return %arg0, %c0_i32 : i32, i32
  }
}

</mosaic_0001>

<llo_original>
// kernel: mlp_forward.1
$region0: #{mlp_forward.1}
  #allocation0 [shape = 'u32[]', space=smem, size = 0x4, offset = 0x4, fixed_abs, tag = 'smem constant byte address 0x4 - core index']
  #allocation1 [shape = 'u32[72,128]{1,0:T(1,128)}', space=vmem, size = 0x9000, scoped, tag = 'internal scratch']
  %s0 = inlined_call_operand.vmem [shape: f32[200,32], index: 0, kind: input, shape index: {}]
  %s1 = inlined_call_operand.vmem [shape: bf16[32,64], index: 1, kind: input, shape index: {}]
  %s2 = inlined_call_operand.vmem [shape: f32[1,64], index: 2, kind: input, shape index: {}]
  %s3 = inlined_call_operand.vmem [shape: bf16[64,64], index: 3, kind: input, shape index: {}]
  %s4 = inlined_call_operand.vmem [shape: f32[1,64], index: 4, kind: input, shape index: {}]
  %s5 = inlined_call_operand.vmem [shape: bf16[64,32], index: 5, kind: input, shape index: {}]
  %s6 = inlined_call_operand.vmem [shape: f32[1,32], index: 6, kind: input, shape index: {}]
  %s7 = inlined_call_operand.vmem [shape: bf16[32,16], index: 7, kind: input, shape index: {}]
  %s8 = inlined_call_operand.vmem [shape: f32[1,16], index: 8, kind: input, shape index: {}]
  %s9 = inlined_call_operand.vmem [shape: f32[200,16], index: 9, kind: output, shape index: {}]
  %s10 = sld [smem:[#allocation0]]
  $region46: #{mlp_forward.1} parent=0
    _
  %s12 = ssub.s32 1, %s10
  %s13 = scalar_select 0, %s12, %s10
  // Predicated region
  $region2: #{mlp_forward.1} parent=0 // pred_check
    _
  $region3: #{mlp_forward.1} parent=0 // pred_check_branch
    %15 = sbr.rel (0) target = $region5
  $region4: #{mlp_forward.1} parent=0 // pred_region
    _
  $region5: #{mlp_forward.1} parent=0 // pred_fallthru
    _
  // Predicated region
  $region6: #{mlp_forward.1} parent=0 // pred_check
    _
  $region7: #{mlp_forward.1} parent=0 // pred_check_branch
    %17 = sbr.rel (0) target = $region9
  $region8: #{mlp_forward.1} parent=0 // pred_region
    _
  $region9: #{mlp_forward.1} parent=0 // pred_fallthru
    _
  // Predicated region
  $region10: #{mlp_forward.1} parent=0 // pred_check
    _
  $region11: #{mlp_forward.1} parent=0 // pred_check_branch
    %19 = sbr.rel (0) target = $region13
  $region12: #{mlp_forward.1} parent=0 // pred_region
    _
  $region13: #{mlp_forward.1} parent=0 // pred_fallthru
    _
  // Predicated region
  $region14: #{mlp_forward.1} parent=0 // pred_check
    _
  $region15: #{mlp_forward.1} parent=0 // pred_check_branch
    %21 = sbr.rel (0) target = $region17
  $region16: #{mlp_forward.1} parent=0 // pred_region
    _
  $region17: #{mlp_forward.1} parent=0 // pred_fallthru
    _
  // Predicated region
  $region18: #{mlp_forward.1} parent=0 // pred_check
    _
  $region19: #{mlp_forward.1} parent=0 // pred_check_branch
    %23 = sbr.rel (0) target = $region21
  $region20: #{mlp_forward.1} parent=0 // pred_region
    _
  $region21: #{mlp_forward.1} parent=0 // pred_fallthru
    _
  // Predicated region
  $region22: #{mlp_forward.1} parent=0 // pred_check
    _
  $region23: #{mlp_forward.1} parent=0 // pred_check_branch
    %25 = sbr.rel (0) target = $region25
  $region24: #{mlp_forward.1} parent=0 // pred_region
    _
  $region25: #{mlp_forward.1} parent=0 // pred_fallthru
    _
  // Predicated region
  $region26: #{mlp_forward.1} parent=0 // pred_check
    _
  $region27: #{mlp_forward.1} parent=0 // pred_check_branch
    %27 = sbr.rel (0) target = $region29
  $region28: #{mlp_forward.1} parent=0 // pred_region
    _
  $region29: #{mlp_forward.1} parent=0 // pred_fallthru
    _
  // Predicated region
  $region30: #{mlp_forward.1} parent=0 // pred_check
    _
  $region31: #{mlp_forward.1} parent=0 // pred_check_branch
    %29 = sbr.rel (0) target = $region33
  $region32: #{mlp_forward.1} parent=0 // pred_region
    _
  $region33: #{mlp_forward.1} parent=0 // pred_fallthru
    _
  // Predicated region
  $region34: #{mlp_forward.1} parent=0 // pred_check
    _
  $region35: #{mlp_forward.1} parent=0 // pred_check_branch
    %31 = sbr.rel (0) target = $region37
  $region36: #{mlp_forward.1} parent=0 // pred_region
    _
  $region37: #{mlp_forward.1} parent=0 // pred_fallthru
    _
  %v33 = vld [vmem:[%s0] sm:$0xff]
  %v34 = vld [vmem:[%s0 + $0x8] sm:$0xff]
  %v35 = vld [vmem:[%s0 + $0x10] sm:$0xff]
  %v36 = vld [vmem:[%s0 + $0x18] sm:$0xff]
  %v37 = vld [vmem:[%s0 + $0x20] sm:$0xff]
  %v38 = vld [vmem:[%s0 + $0x28] sm:$0xff]
  %v39 = vld [vmem:[%s0 + $0x30] sm:$0xff]
  %v40 = vld [vmem:[%s0 + $0x38] sm:$0xff]
  %v41 = vld [vmem:[%s0 + $0x40] sm:$0xff]
  %v42 = vld [vmem:[%s0 + $0x48] sm:$0xff]
  %v43 = vld [vmem:[%s0 + $0x50] sm:$0xff]
  %v44 = vld [vmem:[%s0 + $0x58] sm:$0xff]
  %v45 = vld [vmem:[%s0 + $0x60] sm:$0xff]
  %v46 = vld [vmem:[%s0 + $0x68] sm:$0xff]
  %v47 = vld [vmem:[%s0 + $0x70] sm:$0xff]
  %v48 = vld [vmem:[%s0 + $0x78] sm:$0xff]
  %v49 = vld [vmem:[%s0 + $0x80] sm:$0xff]
  %v50 = vld [vmem:[%s0 + $0x88] sm:$0xff]
  %v51 = vld [vmem:[%s0 + $0x90] sm:$0xff]
  %v52 = vld [vmem:[%s0 + $0x98] sm:$0xff]
  %v53 = vld [vmem:[%s0 + $0xa0] sm:$0xff]
  %v54 = vld [vmem:[%s0 + $0xa8] sm:$0xff]
  %v55 = vld [vmem:[%s0 + $0xb0] sm:$0xff]
  %v56 = vld [vmem:[%s0 + $0xb8] sm:$0xff]
  %v57 = vld [vmem:[%s0 + $0xc0] sm:$0xff]
  %v58 = vpack.c.bf16 %v34, %v33
  %v59 = vpack.c.bf16 %v36, %v35
  %v60 = vpack.c.bf16 %v38, %v37
  %v61 = vpack.c.bf16 %v40, %v39
  %v62 = vpack.c.bf16 %v42, %v41
  %v63 = vpack.c.bf16 %v44, %v43
  %v64 = vpack.c.bf16 %v46, %v45
  %v65 = vpack.c.bf16 %v48, %v47
  %v66 = vpack.c.bf16 %v50, %v49
  %v67 = vpack.c.bf16 %v52, %v51
  %v68 = vpack.c.bf16 %v54, %v53
  %v69 = vpack.c.bf16 %v56, %v55
  %v70 = vpack.c.bf16 %v57, %v57
  %v71 = vld [vmem:[%s1] sm:$0xf]
  %v72 = vld [vmem:[%s1 + $0x4] sm:$0xf]
  %v73 = vld [vmem:[%s1 + $0x8] sm:$0xf]
  %v74 = vld [vmem:[%s1 + $0xc] sm:$0xf]
  %v75 = vld [vmem:[%s2] sm:$0x1]
  %v77 = vperm.slane %v75, 0
  %v83 = vunpack.c.l.b16 %v71
  %v84 = vunpack.c.l.b16 %v72
  %v85 = vunpack.c.l.b16 %v73
  %v86 = vunpack.c.l.b16 %v74
  %v87 = vpack.c.b16 %v84, %v83
  %v88 = vpack.c.b16 %v86, %v85
  %vm91 = vcmask 261120
  %v93 = vsel %vm91, %v58, 0
  %v96 = vsel %vm91, %v59, 0
  %v99 = vsel %vm91, %v60, 0
  %v102 = vsel %vm91, %v61, 0
  %v105 = vsel %vm91, %v62, 0
  %v108 = vsel %vm91, %v63, 0
  %v111 = vsel %vm91, %v64, 0
  %v114 = vsel %vm91, %v65, 0
  %v117 = vsel %vm91, %v66, 0
  %v120 = vsel %vm91, %v67, 0
  %v123 = vsel %vm91, %v68, 0
  %v126 = vsel %vm91, %v69, 0
  %v129 = vsel %vm91, %v70, 0
  %131 = vmatpush.bf16.msra.mxu0 0
  %132 = vmatpush.bf16.msra.mxu0 0
  %133 = vmatpush.bf16.msra.mxu0 0
  %134 = vmatpush.bf16.msra.mxu0 0
  %135 = vmatpush.bf16.msra.mxu0 0
  %136 = vmatpush.bf16.msra.mxu0 0
  %137 = vmatpush.bf16.msra.mxu0 %v88
  %138 = vmatpush.bf16.msra.mxu0 %v87
  %139 = vmatmul.bf16.gmra.mxu0 %v93
  %v140 = vpop.f32.mrf.mxu0
  %v141 = vadd.f32 %v77, %v140
  %v142 = vpop.f32.mrf.mxu0
  %v143 = vadd.f32 %v77, %v142
  %144 = vmatmul.bf16.gmra.mxu0 %v96
  %v145 = vpop.f32.mrf.mxu0
  %v146 = vadd.f32 %v77, %v145
  %v147 = vpop.f32.mrf.mxu0
  %v148 = vadd.f32 %v77, %v147
  %149 = vmatmul.bf16.gmra.mxu0 %v99
  %v150 = vpop.f32.mrf.mxu0
  %v151 = vadd.f32 %v77, %v150
  %v152 = vpop.f32.mrf.mxu0
  %v153 = vadd.f32 %v77, %v152
  %154 = vmatmul.bf16.gmra.mxu0 %v102
  %v155 = vpop.f32.mrf.mxu0
  %v156 = vadd.f32 %v77, %v155
  %v157 = vpop.f32.mrf.mxu0
  %v158 = vadd.f32 %v77, %v157
  %159 = vmatmul.bf16.gmra.mxu0 %v105
  %v160 = vpop.f32.mrf.mxu0
  %v161 = vadd.f32 %v77, %v160
  %v162 = vpop.f32.mrf.mxu0
  %v163 = vadd.f32 %v77, %v162
  %164 = vmatmul.bf16.gmra.mxu0 %v108
  %v165 = vpop.f32.mrf.mxu0
  %v166 = vadd.f32 %v77, %v165
  %v167 = vpop.f32.mrf.mxu0
  %v168 = vadd.f32 %v77, %v167
  %169 = vmatmul.bf16.gmra.mxu0 %v111
  %v170 = vpop.f32.mrf.mxu0
  %v171 = vadd.f32 %v77, %v170
  %v172 = vpop.f32.mrf.mxu0
  %v173 = vadd.f32 %v77, %v172
  %174 = vmatmul.bf16.gmra.mxu0 %v114
  %v175 = vpop.f32.mrf.mxu0
  %v176 = vadd.f32 %v77, %v175
  %v177 = vpop.f32.mrf.mxu0
  %v178 = vadd.f32 %v77, %v177
  %179 = vmatmul.bf16.gmra.mxu0 %v117
  %v180 = vpop.f32.mrf.mxu0
  %v181 = vadd.f32 %v77, %v180
  %v182 = vpop.f32.mrf.mxu0
  %v183 = vadd.f32 %v77, %v182
  %184 = vmatmul.bf16.gmra.mxu0 %v120
  %v185 = vpop.f32.mrf.mxu0
  %v186 = vadd.f32 %v77, %v185
  %v187 = vpop.f32.mrf.mxu0
  %v188 = vadd.f32 %v77, %v187
  %189 = vmatmul.bf16.gmra.mxu0 %v123
  %v190 = vpop.f32.mrf.mxu0
  %v191 = vadd.f32 %v77, %v190
  %v192 = vpop.f32.mrf.mxu0
  %v193 = vadd.f32 %v77, %v192
  %194 = vmatmul.bf16.gmra.mxu0 %v126
  %v195 = vpop.f32.mrf.mxu0
  %v196 = vadd.f32 %v77, %v195
  %v197 = vpop.f32.mrf.mxu0
  %v198 = vadd.f32 %v77, %v197
  %199 = vmatmul.bf16.gmra.mxu0 %v129
  %v200 = vpop.f32.mrf.mxu0
  %v201 = vadd.f32 %v77, %v200
  %v202 = vpop.f32.mrf.mxu0
  %203 = vdwg.mxu0
  %v204 = vmul.f32 %v141, 0.01
  %v205 = vmul.f32 %v143, 0.01
  %v206 = vmul.f32 %v146, 0.01
  %v207 = vmul.f32 %v148, 0.01
  %v208 = vmul.f32 %v151, 0.01
  %v209 = vmul.f32 %v153, 0.01
  %v210 = vmul.f32 %v156, 0.01
  %v211 = vmul.f32 %v158, 0.01
  %v212 = vmul.f32 %v161, 0.01
  %v213 = vmul.f32 %v163, 0.01
  %v214 = vmul.f32 %v166, 0.01
  %v215 = vmul.f32 %v168, 0.01
  %v216 = vmul.f32 %v171, 0.01
  %v217 = vmul.f32 %v173, 0.01
  %v218 = vmul.f32 %v176, 0.01
  %v219 = vmul.f32 %v178, 0.01
  %v220 = vmul.f32 %v181, 0.01
  %v221 = vmul.f32 %v183, 0.01
  %v222 = vmul.f32 %v186, 0.01
  %v223 = vmul.f32 %v188, 0.01
  %v224 = vmul.f32 %v191, 0.01
  %v225 = vmul.f32 %v193, 0.01
  %v226 = vmul.f32 %v196, 0.01
  %v227 = vmul.f32 %v198, 0.01
  %v228 = vmul.f32 %v201, 0.01
  %v229 = vmax.f32 %v141, %v204
  %v230 = vmax.f32 %v143, %v205
  %v231 = vmax.f32 %v146, %v206
  %v232 = vmax.f32 %v148, %v207
  %v233 = vmax.f32 %v151, %v208
  %v234 = vmax.f32 %v153, %v209
  %v235 = vmax.f32 %v156, %v210
  %v236 = vmax.f32 %v158, %v211
  %v237 = vmax.f32 %v161, %v212
  %v238 = vmax.f32 %v163, %v213
  %v239 = vmax.f32 %v166, %v214
  %v240 = vmax.f32 %v168, %v215
  %v241 = vmax.f32 %v171, %v216
  %v242 = vmax.f32 %v173, %v217
  %v243 = vmax.f32 %v176, %v218
  %v244 = vmax.f32 %v178, %v219
  %v245 = vmax.f32 %v181, %v220
  %v246 = vmax.f32 %v183, %v221
  %v247 = vmax.f32 %v186, %v222
  %v248 = vmax.f32 %v188, %v223
  %v249 = vmax.f32 %v191, %v224
  %v250 = vmax.f32 %v193, %v225
  %v251 = vmax.f32 %v196, %v226
  %v252 = vmax.f32 %v198, %v227
  %v253 = vmax.f32 %v201, %v228
  %v254 = vpack.c.bf16 %v230, %v229
  %v255 = vpack.c.bf16 %v232, %v231
  %v256 = vpack.c.bf16 %v234, %v233
  %v257 = vpack.c.bf16 %v236, %v235
  %v258 = vpack.c.bf16 %v238, %v237
  %v259 = vpack.c.bf16 %v240, %v239
  %v260 = vpack.c.bf16 %v242, %v241
  %v261 = vpack.c.bf16 %v244, %v243
  %v262 = vpack.c.bf16 %v246, %v245
  %v263 = vpack.c.bf16 %v248, %v247
  %v264 = vpack.c.bf16 %v250, %v249
  %v265 = vpack.c.bf16 %v252, %v251
  %v266 = vpack.c.bf16 %v253, %v253
  %v267 = vld [vmem:[%s3] sm:$0xf]
  %v268 = vld [vmem:[%s3 + $0x4] sm:$0xf]
  %v269 = vld [vmem:[%s3 + $0x8] sm:$0xf]
  %v270 = vld [vmem:[%s3 + $0xc] sm:$0xf]
  %v271 = vld [vmem:[%s3 + $0x10] sm:$0xf]
  %v272 = vld [vmem:[%s3 + $0x14] sm:$0xf]
  %v273 = vld [vmem:[%s3 + $0x18] sm:$0xf]
  %v274 = vld [vmem:[%s3 + $0x1c] sm:$0xf]
  %v275 = vld [vmem:[%s4] sm:$0x1]
  %v277 = vperm.slane %v275, 0
  %v287 = vunpack.c.l.b16 %v267
  %v288 = vunpack.c.l.b16 %v268
  %v289 = vunpack.c.l.b16 %v269
  %v290 = vunpack.c.l.b16 %v270
  %v291 = vunpack.c.l.b16 %v271
  %v292 = vunpack.c.l.b16 %v272
  %v293 = vunpack.c.l.b16 %v273
  %v294 = vunpack.c.l.b16 %v274
  %v295 = vpack.c.b16 %v288, %v287
  %v296 = vpack.c.b16 %v290, %v289
  %v297 = vpack.c.b16 %v292, %v291
  %v298 = vpack.c.b16 %v294, %v293
  %vm303 = vcmask 523264
  %v305 = vsel %vm303, %v254, 0
  %v308 = vsel %vm303, %v255, 0
  %v311 = vsel %vm303, %v256, 0
  %v314 = vsel %vm303, %v257, 0
  %v317 = vsel %vm303, %v258, 0
  %v320 = vsel %vm303, %v259, 0
  %v323 = vsel %vm303, %v260, 0
  %v326 = vsel %vm303, %v261, 0
  %v329 = vsel %vm303, %v262, 0
  %v332 = vsel %vm303, %v263, 0
  %v335 = vsel %vm303, %v264, 0
  %v338 = vsel %vm303, %v265, 0
  %v341 = vsel %vm303, %v266, 0
  %343 = vmatpush.bf16.msra.mxu0 0
  %344 = vmatpush.bf16.msra.mxu0 0
  %345 = vmatpush.bf16.msra.mxu0 0
  %346 = vmatpush.bf16.msra.mxu0 0
  %347 = vmatpush.bf16.msra.mxu0 %v298
  %348 = vmatpush.bf16.msra.mxu0 %v297
  %349 = vmatpush.bf16.msra.mxu0 %v296
  %350 = vmatpush.bf16.msra.mxu0 %v295
  %351 = vmatmul.bf16.gmra.mxu0 %v305
  %v352 = vpop.f32.mrf.mxu0
  %v353 = vadd.f32 %v277, %v352
  %v354 = vpop.f32.mrf.mxu0
  %v355 = vadd.f32 %v277, %v354
  %356 = vmatmul.bf16.gmra.mxu0 %v308
  %v357 = vpop.f32.mrf.mxu0
  %v358 = vadd.f32 %v277, %v357
  %v359 = vpop.f32.mrf.mxu0
  %v360 = vadd.f32 %v277, %v359
  %361 = vmatmul.bf16.gmra.mxu0 %v311
  %v362 = vpop.f32.mrf.mxu0
  %v363 = vadd.f32 %v277, %v362
  %v364 = vpop.f32.mrf.mxu0
  %v365 = vadd.f32 %v277, %v364
  %366 = vmatmul.bf16.gmra.mxu0 %v314
  %v367 = vpop.f32.mrf.mxu0
  %v368 = vadd.f32 %v277, %v367
  %v369 = vpop.f32.mrf.mxu0
  %v370 = vadd.f32 %v277, %v369
  %371 = vmatmul.bf16.gmra.mxu0 %v317
  %v372 = vpop.f32.mrf.mxu0
  %v373 = vadd.f32 %v277, %v372
  %v374 = vpop.f32.mrf.mxu0
  %v375 = vadd.f32 %v277, %v374
  %376 = vmatmul.bf16.gmra.mxu0 %v320
  %v377 = vpop.f32.mrf.mxu0
  %v378 = vadd.f32 %v277, %v377
  %v379 = vpop.f32.mrf.mxu0
  %v380 = vadd.f32 %v277, %v379
  %381 = vmatmul.bf16.gmra.mxu0 %v323
  %v382 = vpop.f32.mrf.mxu0
  %v383 = vadd.f32 %v277, %v382
  %v384 = vpop.f32.mrf.mxu0
  %v385 = vadd.f32 %v277, %v384
  %386 = vmatmul.bf16.gmra.mxu0 %v326
  %v387 = vpop.f32.mrf.mxu0
  %v388 = vadd.f32 %v277, %v387
  %v389 = vpop.f32.mrf.mxu0
  %v390 = vadd.f32 %v277, %v389
  %391 = vmatmul.bf16.gmra.mxu0 %v329
  %v392 = vpop.f32.mrf.mxu0
  %v393 = vadd.f32 %v277, %v392
  %v394 = vpop.f32.mrf.mxu0
  %v395 = vadd.f32 %v277, %v394
  %396 = vmatmul.bf16.gmra.mxu0 %v332
  %v397 = vpop.f32.mrf.mxu0
  %v398 = vadd.f32 %v277, %v397
  %v399 = vpop.f32.mrf.mxu0
  %v400 = vadd.f32 %v277, %v399
  %401 = vmatmul.bf16.gmra.mxu0 %v335
  %v402 = vpop.f32.mrf.mxu0
  %v403 = vadd.f32 %v277, %v402
  %v404 = vpop.f32.mrf.mxu0
  %v405 = vadd.f32 %v277, %v404
  %406 = vmatmul.bf16.gmra.mxu0 %v338
  %v407 = vpop.f32.mrf.mxu0
  %v408 = vadd.f32 %v277, %v407
  %v409 = vpop.f32.mrf.mxu0
  %v410 = vadd.f32 %v277, %v409
  %411 = vmatmul.bf16.gmra.mxu0 %v341
  %v412 = vpop.f32.mrf.mxu0
  %v413 = vadd.f32 %v277, %v412
  %v414 = vpop.f32.mrf.mxu0
  %415 = vdwg.mxu0
  %v416 = vmul.f32 %v353, 0.01
  %v417 = vmul.f32 %v355, 0.01
  %v418 = vmul.f32 %v358, 0.01
  %v419 = vmul.f32 %v360, 0.01
  %v420 = vmul.f32 %v363, 0.01
  %v421 = vmul.f32 %v365, 0.01
  %v422 = vmul.f32 %v368, 0.01
  %v423 = vmul.f32 %v370, 0.01
  %v424 = vmul.f32 %v373, 0.01
  %v425 = vmul.f32 %v375, 0.01
  %v426 = vmul.f32 %v378, 0.01
  %v427 = vmul.f32 %v380, 0.01
  %v428 = vmul.f32 %v383, 0.01
  %v429 = vmul.f32 %v385, 0.01
  %v430 = vmul.f32 %v388, 0.01
  %v431 = vmul.f32 %v390, 0.01
  %v432 = vmul.f32 %v393, 0.01
  %v433 = vmul.f32 %v395, 0.01
  %v434 = vmul.f32 %v398, 0.01
  %v435 = vmul.f32 %v400, 0.01
  %v436 = vmul.f32 %v403, 0.01
  %v437 = vmul.f32 %v405, 0.01
  %v438 = vmul.f32 %v408, 0.01
  %v439 = vmul.f32 %v410, 0.01
  %v440 = vmul.f32 %v413, 0.01
  %v441 = vmax.f32 %v353, %v416
  %v442 = vmax.f32 %v355, %v417
  %v443 = vmax.f32 %v358, %v418
  %v444 = vmax.f32 %v360, %v419
  %v445 = vmax.f32 %v363, %v420
  %v446 = vmax.f32 %v365, %v421
  %v447 = vmax.f32 %v368, %v422
  %v448 = vmax.f32 %v370, %v423
  %v449 = vmax.f32 %v373, %v424
  %v450 = vmax.f32 %v375, %v425
  %v451 = vmax.f32 %v378, %v426
  %v452 = vmax.f32 %v380, %v427
  %v453 = vmax.f32 %v383, %v428
  %v454 = vmax.f32 %v385, %v429
  %v455 = vmax.f32 %v388, %v430
  %v456 = vmax.f32 %v390, %v431
  %v457 = vmax.f32 %v393, %v432
  %v458 = vmax.f32 %v395, %v433
  %v459 = vmax.f32 %v398, %v434
  %v460 = vmax.f32 %v400, %v435
  %v461 = vmax.f32 %v403, %v436
  %v462 = vmax.f32 %v405, %v437
  %v463 = vmax.f32 %v408, %v438
  %v464 = vmax.f32 %v410, %v439
  %v465 = vmax.f32 %v413, %v440
  %v466 = vpack.c.bf16 %v442, %v441
  %v467 = vpack.c.bf16 %v444, %v443
  %v468 = vpack.c.bf16 %v446, %v445
  %v469 = vpack.c.bf16 %v448, %v447
  %v470 = vpack.c.bf16 %v450, %v449
  %v471 = vpack.c.bf16 %v452, %v451
  %v472 = vpack.c.bf16 %v454, %v453
  %v473 = vpack.c.bf16 %v456, %v455
  %v474 = vpack.c.bf16 %v458, %v457
  %v475 = vpack.c.bf16 %v460, %v459
  %v476 = vpack.c.bf16 %v462, %v461
  %v477 = vpack.c.bf16 %v464, %v463
  %v478 = vpack.c.bf16 %v465, %v465
  %v479 = vld [vmem:[%s5] sm:$0xf]
  %v480 = vld [vmem:[%s5 + $0x4] sm:$0xf]
  %v481 = vld [vmem:[%s5 + $0x8] sm:$0xf]
  %v482 = vld [vmem:[%s5 + $0xc] sm:$0xf]
  %v483 = vld [vmem:[%s5 + $0x10] sm:$0xf]
  %v484 = vld [vmem:[%s5 + $0x14] sm:$0xf]
  %v485 = vld [vmem:[%s5 + $0x18] sm:$0xf]
  %v486 = vld [vmem:[%s5 + $0x1c] sm:$0xf]
  %v487 = vld [vmem:[%s6] sm:$0x1]
  %v489 = vperm.slane %v487, 0
  %v499 = vunpack.c.l.b16 %v479
  %v500 = vunpack.c.l.b16 %v480
  %v501 = vunpack.c.l.b16 %v481
  %v502 = vunpack.c.l.b16 %v482
  %v503 = vunpack.c.l.b16 %v483
  %v504 = vunpack.c.l.b16 %v484
  %v505 = vunpack.c.l.b16 %v485
  %v506 = vunpack.c.l.b16 %v486
  %v507 = vpack.c.b16 %v500, %v499
  %v508 = vpack.c.b16 %v502, %v501
  %v509 = vpack.c.b16 %v504, %v503
  %v510 = vpack.c.b16 %v506, %v505
  %v516 = vsel %vm303, %v466, 0
  %v519 = vsel %vm303, %v467, 0
  %v522 = vsel %vm303, %v468, 0
  %v525 = vsel %vm303, %v469, 0
  %v528 = vsel %vm303, %v470, 0
  %v531 = vsel %vm303, %v471, 0
  %v534 = vsel %vm303, %v472, 0
  %v537 = vsel %vm303, %v473, 0
  %v540 = vsel %vm303, %v474, 0
  %v543 = vsel %vm303, %v475, 0
  %v546 = vsel %vm303, %v476, 0
  %v549 = vsel %vm303, %v477, 0
  %v552 = vsel %vm303, %v478, 0
  %554 = vmatpush.bf16.msra.mxu0 0
  %555 = vmatpush.bf16.msra.mxu0 0
  %556 = vmatpush.bf16.msra.mxu0 0
  %557 = vmatpush.bf16.msra.mxu0 0
  %558 = vmatpush.bf16.msra.mxu0 %v510
  %559 = vmatpush.bf16.msra.mxu0 %v509
  %560 = vmatpush.bf16.msra.mxu0 %v508
  %561 = vmatpush.bf16.msra.mxu0 %v507
  %562 = vmatmul.bf16.gmra.mxu0 %v516
  %v563 = vpop.f32.mrf.mxu0
  %v564 = vadd.f32 %v489, %v563
  %v565 = vpop.f32.mrf.mxu0
  %v566 = vadd.f32 %v489, %v565
  %567 = vmatmul.bf16.gmra.mxu0 %v519
  %v568 = vpop.f32.mrf.mxu0
  %v569 = vadd.f32 %v489, %v568
  %v570 = vpop.f32.mrf.mxu0
  %v571 = vadd.f32 %v489, %v570
  %572 = vmatmul.bf16.gmra.mxu0 %v522
  %v573 = vpop.f32.mrf.mxu0
  %v574 = vadd.f32 %v489, %v573
  %v575 = vpop.f32.mrf.mxu0
  %v576 = vadd.f32 %v489, %v575
  %577 = vmatmul.bf16.gmra.mxu0 %v525
  %v578 = vpop.f32.mrf.mxu0
  %v579 = vadd.f32 %v489, %v578
  %v580 = vpop.f32.mrf.mxu0
  %v581 = vadd.f32 %v489, %v580
  %582 = vmatmul.bf16.gmra.mxu0 %v528
  %v583 = vpop.f32.mrf.mxu0
  %v584 = vadd.f32 %v489, %v583
  %v585 = vpop.f32.mrf.mxu0
  %v586 = vadd.f32 %v489, %v585
  %587 = vmatmul.bf16.gmra.mxu0 %v531
  %v588 = vpop.f32.mrf.mxu0
  %v589 = vadd.f32 %v489, %v588
  %v590 = vpop.f32.mrf.mxu0
  %v591 = vadd.f32 %v489, %v590
  %592 = vmatmul.bf16.gmra.mxu0 %v534
  %v593 = vpop.f32.mrf.mxu0
  %v594 = vadd.f32 %v489, %v593
  %v595 = vpop.f32.mrf.mxu0
  %v596 = vadd.f32 %v489, %v595
  %597 = vmatmul.bf16.gmra.mxu0 %v537
  %v598 = vpop.f32.mrf.mxu0
  %v599 = vadd.f32 %v489, %v598
  %v600 = vpop.f32.mrf.mxu0
  %v601 = vadd.f32 %v489, %v600
  %602 = vmatmul.bf16.gmra.mxu0 %v540
  %v603 = vpop.f32.mrf.mxu0
  %v604 = vadd.f32 %v489, %v603
  %v605 = vpop.f32.mrf.mxu0
  %v606 = vadd.f32 %v489, %v605
  %607 = vmatmul.bf16.gmra.mxu0 %v543
  %v608 = vpop.f32.mrf.mxu0
  %v609 = vadd.f32 %v489, %v608
  %v610 = vpop.f32.mrf.mxu0
  %v611 = vadd.f32 %v489, %v610
  %612 = vmatmul.bf16.gmra.mxu0 %v546
  %v613 = vpop.f32.mrf.mxu0
  %v614 = vadd.f32 %v489, %v613
  %v615 = vpop.f32.mrf.mxu0
  %v616 = vadd.f32 %v489, %v615
  %617 = vmatmul.bf16.gmra.mxu0 %v549
  %v618 = vpop.f32.mrf.mxu0
  %v619 = vadd.f32 %v489, %v618
  %v620 = vpop.f32.mrf.mxu0
  %v621 = vadd.f32 %v489, %v620
  %622 = vmatmul.bf16.gmra.mxu0 %v552
  %v623 = vpop.f32.mrf.mxu0
  %v624 = vadd.f32 %v489, %v623
  %v625 = vpop.f32.mrf.mxu0
  %626 = vdwg.mxu0
  %v627 = vmul.f32 %v564, 0.01
  %v628 = vmul.f32 %v566, 0.01
  %v629 = vmul.f32 %v569, 0.01
  %v630 = vmul.f32 %v571, 0.01
  %v631 = vmul.f32 %v574, 0.01
  %v632 = vmul.f32 %v576, 0.01
  %v633 = vmul.f32 %v579, 0.01
  %v634 = vmul.f32 %v581, 0.01
  %v635 = vmul.f32 %v584, 0.01
  %v636 = vmul.f32 %v586, 0.01
  %v637 = vmul.f32 %v589, 0.01
  %v638 = vmul.f32 %v591, 0.01
  %v639 = vmul.f32 %v594, 0.01
  %v640 = vmul.f32 %v596, 0.01
  %v641 = vmul.f32 %v599, 0.01
  %v642 = vmul.f32 %v601, 0.01
  %v643 = vmul.f32 %v604, 0.01
  %v644 = vmul.f32 %v606, 0.01
  %v645 = vmul.f32 %v609, 0.01
  %v646 = vmul.f32 %v611, 0.01
  %v647 = vmul.f32 %v614, 0.01
  %v648 = vmul.f32 %v616, 0.01
  %v649 = vmul.f32 %v619, 0.01
  %v650 = vmul.f32 %v621, 0.01
  %v651 = vmul.f32 %v624, 0.01
  %v652 = vmax.f32 %v564, %v627
  %v653 = vmax.f32 %v566, %v628
  %v654 = vmax.f32 %v569, %v629
  %v655 = vmax.f32 %v571, %v630
  %v656 = vmax.f32 %v574, %v631
  %v657 = vmax.f32 %v576, %v632
  %v658 = vmax.f32 %v579, %v633
  %v659 = vmax.f32 %v581, %v634
  %v660 = vmax.f32 %v584, %v635
  %v661 = vmax.f32 %v586, %v636
  %v662 = vmax.f32 %v589, %v637
  %v663 = vmax.f32 %v591, %v638
  %v664 = vmax.f32 %v594, %v639
  %v665 = vmax.f32 %v596, %v640
  %v666 = vmax.f32 %v599, %v641
  %v667 = vmax.f32 %v601, %v642
  %v668 = vmax.f32 %v604, %v643
  %v669 = vmax.f32 %v606, %v644
  %v670 = vmax.f32 %v609, %v645
  %v671 = vmax.f32 %v611, %v646
  %v672 = vmax.f32 %v614, %v647
  %v673 = vmax.f32 %v616, %v648
  %v674 = vmax.f32 %v619, %v649
  %v675 = vmax.f32 %v621, %v650
  %v676 = vmax.f32 %v624, %v651
  %v677 = vpack.c.bf16 %v653, %v652
  %v678 = vpack.c.bf16 %v655, %v654
  %v679 = vpack.c.bf16 %v657, %v656
  %v680 = vpack.c.bf16 %v659, %v658
  %v681 = vpack.c.bf16 %v661, %v660
  %v682 = vpack.c.bf16 %v663, %v662
  %v683 = vpack.c.bf16 %v665, %v664
  %v684 = vpack.c.bf16 %v667, %v666
  %v685 = vpack.c.bf16 %v669, %v668
  %v686 = vpack.c.bf16 %v671, %v670
  %v687 = vpack.c.bf16 %v673, %v672
  %v688 = vpack.c.bf16 %v675, %v674
  %v689 = vpack.c.bf16 %v676, %v676
  %v690 = vld [vmem:[%s7] sm:$0xf]
  %v691 = vld [vmem:[%s7 + $0x4] sm:$0xf]
  %v692 = vld [vmem:[%s7 + $0x8] sm:$0xf]
  %v693 = vld [vmem:[%s7 + $0xc] sm:$0xf]
  %v694 = vld [vmem:[%s8] sm:$0x1]
  %v696 = vperm.slane %v694, 0
  %v702 = vunpack.c.l.b16 %v690
  %v703 = vunpack.c.l.b16 %v691
  %v704 = vunpack.c.l.b16 %v692
  %v705 = vunpack.c.l.b16 %v693
  %v706 = vpack.c.b16 %v703, %v702
  %v707 = vpack.c.b16 %v705, %v704
  %v711 = vsel %vm91, %v677, 0
  %v714 = vsel %vm91, %v678, 0
  %v717 = vsel %vm91, %v679, 0
  %v720 = vsel %vm91, %v680, 0
  %v723 = vsel %vm91, %v681, 0
  %v726 = vsel %vm91, %v682, 0
  %v729 = vsel %vm91, %v683, 0
  %v732 = vsel %vm91, %v684, 0
  %v735 = vsel %vm91, %v685, 0
  %v738 = vsel %vm91, %v686, 0
  %v741 = vsel %vm91, %v687, 0
  %v744 = vsel %vm91, %v688, 0
  %v747 = vsel %vm91, %v689, 0
  %749 = vmatpush.bf16.msra.mxu0 0
  %750 = vmatpush.bf16.msra.mxu0 0
  %751 = vmatpush.bf16.msra.mxu0 0
  %752 = vmatpush.bf16.msra.mxu0 0
  %753 = vmatpush.bf16.msra.mxu0 0
  %754 = vmatpush.bf16.msra.mxu0 0
  %755 = vmatpush.bf16.msra.mxu0 %v707
  %756 = vmatpush.bf16.msra.mxu0 %v706
  %757 = vmatmul.bf16.gmra.mxu0 %v711
  %v758 = vpop.f32.mrf.mxu0
  %v759 = vadd.f32 %v696, %v758
  %v760 = vpop.f32.mrf.mxu0
  %v761 = vadd.f32 %v696, %v760
  %762 = vmatmul.bf16.gmra.mxu0 %v714
  %v763 = vpop.f32.mrf.mxu0
  %v764 = vadd.f32 %v696, %v763
  %v765 = vpop.f32.mrf.mxu0
  %v766 = vadd.f32 %v696, %v765
  %767 = vmatmul.bf16.gmra.mxu0 %v717
  %v768 = vpop.f32.mrf.mxu0
  %v769 = vadd.f32 %v696, %v768
  %v770 = vpop.f32.mrf.mxu0
  %v771 = vadd.f32 %v696, %v770
  %772 = vmatmul.bf16.gmra.mxu0 %v720
  %v773 = vpop.f32.mrf.mxu0
  %v774 = vadd.f32 %v696, %v773
  %v775 = vpop.f32.mrf.mxu0
  %v776 = vadd.f32 %v696, %v775
  %777 = vmatmul.bf16.gmra.mxu0 %v723
  %v778 = vpop.f32.mrf.mxu0
  %v779 = vadd.f32 %v696, %v778
  %v780 = vpop.f32.mrf.mxu0
  %v781 = vadd.f32 %v696, %v780
  %782 = vmatmul.bf16.gmra.mxu0 %v726
  %v783 = vpop.f32.mrf.mxu0
  %v784 = vadd.f32 %v696, %v783
  %v785 = vpop.f32.mrf.mxu0
  %v786 = vadd.f32 %v696, %v785
  %787 = vmatmul.bf16.gmra.mxu0 %v729
  %v788 = vpop.f32.mrf.mxu0
  %v789 = vadd.f32 %v696, %v788
  %v790 = vpop.f32.mrf.mxu0
  %v791 = vadd.f32 %v696, %v790
  %792 = vmatmul.bf16.gmra.mxu0 %v732
  %v793 = vpop.f32.mrf.mxu0
  %v794 = vadd.f32 %v696, %v793
  %v795 = vpop.f32.mrf.mxu0
  %v796 = vadd.f32 %v696, %v795
  %797 = vmatmul.bf16.gmra.mxu0 %v735
  %v798 = vpop.f32.mrf.mxu0
  %v799 = vadd.f32 %v696, %v798
  %v800 = vpop.f32.mrf.mxu0
  %v801 = vadd.f32 %v696, %v800
  %802 = vmatmul.bf16.gmra.mxu0 %v738
  %v803 = vpop.f32.mrf.mxu0
  %v804 = vadd.f32 %v696, %v803
  %v805 = vpop.f32.mrf.mxu0
  %v806 = vadd.f32 %v696, %v805
  %807 = vmatmul.bf16.gmra.mxu0 %v741
  %v808 = vpop.f32.mrf.mxu0
  %v809 = vadd.f32 %v696, %v808
  %v810 = vpop.f32.mrf.mxu0
  %v811 = vadd.f32 %v696, %v810
  %812 = vmatmul.bf16.gmra.mxu0 %v744
  %v813 = vpop.f32.mrf.mxu0
  %v814 = vadd.f32 %v696, %v813
  %v815 = vpop.f32.mrf.mxu0
  %v816 = vadd.f32 %v696, %v815
  %817 = vmatmul.bf16.gmra.mxu0 %v747
  %v818 = vpop.f32.mrf.mxu0
  %v819 = vadd.f32 %v696, %v818
  %v820 = vpop.f32.mrf.mxu0
  %821 = vdwg.mxu0
  %vm822 = vcmask 130048
  %823 = vst.msk [vmem:[%s9] sm:$0xff] %vm822, %v759
  %824 = vst.msk [vmem:[%s9 + $0x8] sm:$0xff] %vm822, %v761
  %825 = vst.msk [vmem:[%s9 + $0x10] sm:$0xff] %vm822, %v764
  %826 = vst.msk [vmem:[%s9 + $0x18] sm:$0xff] %vm822, %v766
  %827 = vst.msk [vmem:[%s9 + $0x20] sm:$0xff] %vm822, %v769
  %828 = vst.msk [vmem:[%s9 + $0x28] sm:$0xff] %vm822, %v771
  %829 = vst.msk [vmem:[%s9 + $0x30] sm:$0xff] %vm822, %v774
  %830 = vst.msk [vmem:[%s9 + $0x38] sm:$0xff] %vm822, %v776
  %831 = vst.msk [vmem:[%s9 + $0x40] sm:$0xff] %vm822, %v779
  %832 = vst.msk [vmem:[%s9 + $0x48] sm:$0xff] %vm822, %v781
  %833 = vst.msk [vmem:[%s9 + $0x50] sm:$0xff] %vm822, %v784
  %834 = vst.msk [vmem:[%s9 + $0x58] sm:$0xff] %vm822, %v786
  %835 = vst.msk [vmem:[%s9 + $0x60] sm:$0xff] %vm822, %v789
  %836 = vst.msk [vmem:[%s9 + $0x68] sm:$0xff] %vm822, %v791
  %837 = vst.msk [vmem:[%s9 + $0x70] sm:$0xff] %vm822, %v794
  %838 = vst.msk [vmem:[%s9 + $0x78] sm:$0xff] %vm822, %v796
  %839 = vst.msk [vmem:[%s9 + $0x80] sm:$0xff] %vm822, %v799
  %840 = vst.msk [vmem:[%s9 + $0x88] sm:$0xff] %vm822, %v801
  %841 = vst.msk [vmem:[%s9 + $0x90] sm:$0xff] %vm822, %v804
  %842 = vst.msk [vmem:[%s9 + $0x98] sm:$0xff] %vm822, %v806
  %843 = vst.msk [vmem:[%s9 + $0xa0] sm:$0xff] %vm822, %v809
  %844 = vst.msk [vmem:[%s9 + $0xa8] sm:$0xff] %vm822, %v811
  %845 = vst.msk [vmem:[%s9 + $0xb0] sm:$0xff] %vm822, %v814
  %846 = vst.msk [vmem:[%s9 + $0xb8] sm:$0xff] %vm822, %v816
  %847 = vst.msk [vmem:[%s9 + $0xc0] sm:$0xff] %vm822, %v819
  // Predicated region
  $region38: #{mlp_forward.1} parent=0 // pred_check
    _
  $region39: #{mlp_forward.1} parent=0 // pred_check_branch
    %849 = sbr.rel (0) target = $region41
  $region40: #{mlp_forward.1} parent=0 // pred_region
    _
  $region41: #{mlp_forward.1} parent=0 // pred_fallthru
    _
  // Predicated region
  $region42: #{mlp_forward.1} parent=0 // pred_check
    _
  $region43: #{mlp_forward.1} parent=0 // pred_check_branch
    %851 = sbr.rel (0) target = $region45
  $region44: #{mlp_forward.1} parent=0 // pred_region
    _
  $region45: #{mlp_forward.1} parent=0 // pred_fallthru
    _

</llo_original>
